<compile_context>
chip_gen: v6e
topology: v6e:2x2x1
jax: 0.10.0
libtpu: 0.0.40
codegen_flags: <defaults>
</compile_context>

<pallas_src>
import functools

import jax
import jax.numpy as jnp
from jax.experimental import pallas as pl
from jax.experimental.pallas import tpu as pltpu

BN_EPS = 1e-5        # torch.nn.BatchNorm1d default eps
_SUBLANE = 8


def _round_up(x, m):
    return ((x + m - 1) // m) * m


def _stats_kernel(x_ref, w_emb_ref, b_emb_ref, stats_ref, *,
                  tile_rows, last_tile, last_count):
    """Per-tile BatchNorm partial statistics: sublane 0 = sum(h), sublane 1 = sum((h-mean_tile)^2)."""
    h = jnp.dot(x_ref[...], w_emb_ref[...], preferred_element_type=jnp.float32)
    h = jnp.maximum(h + b_emb_ref[...], 0.0)                     # [TN, H]
    H = h.shape[1]

    def emit(s, m2):
        rows = jax.lax.broadcasted_iota(jnp.int32, (_SUBLANE, H), 0)
        block = jnp.where(rows == 0, jnp.broadcast_to(s, (_SUBLANE, H)),
                          jnp.where(rows == 1, jnp.broadcast_to(m2, (_SUBLANE, H)), 0.0))
        stats_ref[...] = block.reshape(1, _SUBLANE, H)

    tile = pl.program_id(0)

    @pl.when(tile != last_tile)                                  # full tiles: unmasked path
    def _full():
        s = jnp.sum(h, axis=0, keepdims=True)
        d = h - s * (1.0 / tile_rows)
        emit(s, jnp.sum(d * d, axis=0, keepdims=True))

    @pl.when(tile == last_tile)                                  # ragged tile: mask padded rows
    def _ragged():
        row = jax.lax.broadcasted_iota(jnp.int32, (tile_rows, 1), 0)
        valid = row < last_count
        hm = jnp.where(valid, h, 0.0)
        s = jnp.sum(hm, axis=0, keepdims=True)
        d = jnp.where(valid, h - s * (1.0 / last_count), 0.0)
        emit(s, jnp.sum(d * d, axis=0, keepdims=True))


def _apply_kernel(x_ref, w_emb_ref, b_emb_ref, scale_ref, shift_ref,
                  w_out_ref, b_out_ref, emb_ref, yout_ref):
    """emb = tanh(h * scale + shift) with the BN affine folded into (scale, shift); both heads."""
    h = jnp.dot(x_ref[...], w_emb_ref[...], preferred_element_type=jnp.float32)
    h = jnp.maximum(h + b_emb_ref[...], 0.0)                     # [TN, H]
    emb = jnp.tanh(h * scale_ref[...] + shift_ref[...])
    emb_ref[...] = emb                                           # natural-width [TN, H] store
    yout_ref[...] = (jnp.dot(emb, w_out_ref[...], preferred_element_type=jnp.float32)
                     + b_out_ref[...])                           # [TN, 2]: col 0 = y0, col 1 = y1


def tlearner_forward(features, params, *, block_rows=2048):
    """features: [N, F] float32 -> (y0_pred [N], y1_pred [N], emb [N, H])."""
    features = features.astype(jnp.float32)
    N, F = features.shape
    H = params["w_emb"].shape[1]

    # --- batch tiling: sublane-aligned tiles, capped by a conservative double-buffered VMEM budget
    #     (keeps one code path safe on v7x's 64 MiB physical / 32 MiB scoped VMEM). ---
    bytes_per_row = 2 * 4 * (F + H + 2)                          # double-buffered f32 x/emb/yout
    max_tn = max(_SUBLANE, ((16 << 20) // bytes_per_row) // _SUBLANE * _SUBLANE)
    TN = min(_round_up(block_rows, _SUBLANE), _round_up(N, _SUBLANE), max_tn)
    num_tiles = -(-N // TN)
    N_pad = num_tiles * TN
    x = jnp.pad(features, ((0, N_pad - N), (0, 0)))

    w_emb = params["w_emb"].astype(jnp.float32)                  # [F, H]
    b_emb = params["b_emb"].reshape(1, H).astype(jnp.float32)
    w_out = params["w_out"].astype(jnp.float32)                  # [H, 2]
    b_out = params["b_out"].reshape(1, 2).astype(jnp.float32)

    tile_bytes = 2 * (TN * F * 4 + TN * H * 4 + TN * 2 * 4)
    param_bytes = 4 * (F * H + 4 * H + 2 * H + 2)
    vmem_limit = int(min(max(tile_bytes + param_bytes + (4 << 20), 8 << 20), 32 << 20))
    cparams = pltpu.CompilerParams(dimension_semantics=("parallel",),
                                   vmem_limit_bytes=vmem_limit)

    const = lambda i: (0, 0)
    tilemap = lambda i: (i, 0)

    # ---------- pass 1: per-tile BN partial statistics ----------
    last_tile = num_tiles - 1
    last_count = N - last_tile * TN
    stats = pl.pallas_call(
        functools.partial(_stats_kernel, tile_rows=TN,
                          last_tile=last_tile, last_count=last_count),
        out_shape=jax.ShapeDtypeStruct((num_tiles, _SUBLANE, H), jnp.float32),
        grid=(num_tiles,),
        in_specs=[pl.BlockSpec((TN, F), tilemap),
                  pl.BlockSpec((F, H), const),
                  pl.BlockSpec((1, H), const)],
        out_specs=pl.BlockSpec((1, _SUBLANE, H), lambda i: (i, 0, 0)),
        compiler_params=cparams,
    )(x, w_emb, b_emb)

    # ---------- combine partial statistics (Chan's parallel variance; tiny host-side math) ----------
    sums = stats[:, 0, :]                                        # [num_tiles, H]
    m2s = stats[:, 1, :]                                         # [num_tiles, H]
    counts = jnp.asarray([TN] * last_tile + [last_count], jnp.float32)   # static per-tile row counts
    mean_t = sums / counts[:, None]
    mean = jnp.sum(sums, axis=0) / N
    m2 = jnp.sum(m2s, axis=0) + jnp.sum(counts[:, None] * jnp.square(mean_t - mean), axis=0)
    var = m2 / N                                                 # training-mode (biased) batch variance
    scale_v = params["gamma"].astype(jnp.float32) * jax.lax.rsqrt(var + BN_EPS)
    shift_v = params["beta"].astype(jnp.float32) - mean * scale_v
    scale = scale_v.reshape(1, H)
    shift = shift_v.reshape(1, H)

    # ---------- pass 2: recompute h, BN affine + tanh, both outcome heads ----------
    emb_full, yout = pl.pallas_call(
        _apply_kernel,
        out_shape=(jax.ShapeDtypeStruct((N_pad, H), jnp.float32),
                   jax.ShapeDtypeStruct((N_pad, 2), jnp.float32)),
        grid=(num_tiles,),
        in_specs=[pl.BlockSpec((TN, F), tilemap),
                  pl.BlockSpec((F, H), const),
                  pl.BlockSpec((1, H), const),
                  pl.BlockSpec((1, H), const),
                  pl.BlockSpec((1, H), const),
                  pl.BlockSpec((H, 2), const),
                  pl.BlockSpec((1, 2), const)],
        out_specs=(pl.BlockSpec((TN, H), tilemap),
                   pl.BlockSpec((TN, 2), tilemap)),
        compiler_params=cparams,
    )(x, w_emb, b_emb, scale, shift, w_out, b_out)

    emb = emb_full[:N]
    return yout[:N, 0], yout[:N, 1], emb


def init_params(key, num_features, num_hidden=32):
    """Mirrors PyTorch Linear default init U(-1/sqrt(fan_in), +1/sqrt(fan_in)) and BatchNorm1d
    affine defaults (gamma=1, beta=0). Weights are stored pre-transposed as [in, out]."""
    k_we, k_be, k_w0, k_b0, k_w1, k_b1 = jax.random.split(key, 6)

    be = 1.0 / jnp.sqrt(jnp.float32(num_features))
    w_emb = jax.random.uniform(k_we, (num_features, num_hidden), jnp.float32, -be, be)
    b_emb = jax.random.uniform(k_be, (num_hidden,), jnp.float32, -be, be)

    gamma = jnp.ones((num_hidden,), jnp.float32)
    beta = jnp.zeros((num_hidden,), jnp.float32)

    bo = 1.0 / jnp.sqrt(jnp.float32(num_hidden))
    w_t0 = jax.random.uniform(k_w0, (num_hidden, 1), jnp.float32, -bo, bo)
    b_t0 = jax.random.uniform(k_b0, (1,), jnp.float32, -bo, bo)
    w_t1 = jax.random.uniform(k_w1, (num_hidden, 1), jnp.float32, -bo, bo)
    b_t1 = jax.random.uniform(k_b1, (1,), jnp.float32, -bo, bo)

    return {
        "w_emb": w_emb, "b_emb": b_emb,
        "gamma": gamma, "beta": beta,
        "w_out": jnp.concatenate([w_t0, w_t1], axis=1),   # [H, 2]  (col 0 = t0, col 1 = t1)
        "b_out": jnp.concatenate([b_t0, b_t1], axis=0),   # [2]
    }


def tlearner_reference(features, params):
    """Pure-JAX reference of the same forward pass (training-mode BN, biased variance)."""
    h = jnp.maximum(features @ params["w_emb"] + params["b_emb"], 0.0)
    mean = jnp.mean(h, axis=0, keepdims=True)
    var = jnp.mean(jnp.square(h - mean), axis=0, keepdims=True)
    emb = jnp.tanh((h - mean) * jax.lax.rsqrt(var + BN_EPS)
                   * params["gamma"] + params["beta"])
    yout = emb @ params["w_out"] + params["b_out"]
    return yout[:, 0], yout[:, 1], emb


if __name__ == "__main__":
    # Small demo shapes. N=300 exercises the ragged-row masking of the BN statistics; the second
    # run (block_rows=128) exercises the multi-tile partial-statistics combination path.
    N, F, H = 300, 16, 32

    key = jax.random.PRNGKey(0)
    k_x, k_p = jax.random.split(key)
    features = jax.random.normal(k_x, (N, F), jnp.float32)
    params = init_params(k_p, F, H)

    y0_ref, y1_ref, emb_ref = tlearner_reference(features, params)

    # Default (large-tile) configuration.
    y0_pred, y1_pred, emb = tlearner_forward(features, params)
    jax.block_until_ready((y0_pred, y1_pred, emb))
    assert y0_pred.shape == (N,)
    assert y1_pred.shape == (N,)
    assert emb.shape == (N, H)
    assert bool(jnp.allclose(y0_pred, y0_ref, atol=2e-3, rtol=2e-3))
    assert bool(jnp.allclose(y1_pred, y1_ref, atol=2e-3, rtol=2e-3))
    assert bool(jnp.allclose(emb, emb_ref, atol=2e-3, rtol=2e-3))

    # Multi-tile / ragged-last-tile correctness check (small tiles only to exercise that path;
    # production uses the large default tile size).
    y0_m, y1_m, emb_m = tlearner_forward(features, params, block_rows=128)
    jax.block_until_ready((y0_m, y1_m, emb_m))
    assert bool(jnp.allclose(y0_m, y0_ref, atol=2e-3, rtol=2e-3))
    assert bool(jnp.allclose(y1_m, y1_ref, atol=2e-3, rtol=2e-3))
    assert bool(jnp.allclose(emb_m, emb_ref, atol=2e-3, rtol=2e-3))

    print("KERNEL_OK")
</pallas_src>

<mosaic_0001>
module attributes {stable_mosaic.version = 11 : i64} {
  func.func @_stats_kernel(%arg0: i32, %arg1: memref<304x16xf32, #tpu.memory_space<vmem>>, %arg2: memref<16x32xf32, #tpu.memory_space<vmem>>, %arg3: memref<1x32xf32, #tpu.memory_space<vmem>>, %arg4: memref<1x8x32xf32, #tpu.memory_space<vmem>>) attributes {dimension_semantics = [#tpu.dimension_semantics<parallel>], iteration_bounds = array<i64: 1>, scalar_prefetch = 0 : i64, scratch_operands = 0 : i64, tpu.core_type = #tpu.core_type<tc>, window_params = [{transform_indices = @transform_0, window_bounds = array<i64: 304, 16>}, {pipeline_mode = #tpu.pipeline_mode<synchronous>, transform_indices = @transform_1, window_bounds = array<i64: 16, 32>}, {pipeline_mode = #tpu.pipeline_mode<synchronous>, transform_indices = @transform_2, window_bounds = array<i64: 1, 32>}, {transform_indices = @transform_3, window_bounds = array<i64: 1, 8, 32>}]} {
    %c0 = arith.constant 0 : index
    %c0_0 = arith.constant 0 : index
    %0 = vector.load %arg1[%c0, %c0_0] : memref<304x16xf32, #tpu.memory_space<vmem>>, vector<304x16xf32>
    %c0_1 = arith.constant 0 : index
    %c0_2 = arith.constant 0 : index
    %1 = vector.load %arg2[%c0_1, %c0_2] : memref<16x32xf32, #tpu.memory_space<vmem>>, vector<16x32xf32>
    %cst = arith.constant dense<0.000000e+00> : vector<304x32xf32>
    %2 = tpu.matmul %0, %1, %cst {dimension_numbers = #tpu.dot_dimension_numbers<[1], [0], [0], [1], [0, 0, 1, 1], [], []>} : vector<304x16xf32>, vector<16x32xf32>, vector<304x32xf32> -> vector<304x32xf32>
    %c0_3 = arith.constant 0 : index
    %c0_4 = arith.constant 0 : index
    %3 = vector.load %arg3[%c0_3, %c0_4] : memref<1x32xf32, #tpu.memory_space<vmem>>, vector<1x32xf32>
    %4 = vector.broadcast %3 : vector<1x32xf32> to vector<304x32xf32>
    %5 = arith.addf %2, %4 : vector<304x32xf32>
    %cst_5 = arith.constant 0.000000e+00 : f32
    %6 = vector.broadcast %cst_5 : f32 to vector<304x32xf32>
    %7 = arith.maximumf %5, %6 : vector<304x32xf32>
    %c0_i32 = arith.constant 0 : i32
    %8 = arith.cmpi ne, %arg0, %c0_i32 : i32
    %9 = arith.extui %8 : i1 to i32
    %c0_i32_6 = arith.constant 0 : i32
    %10 = arith.cmpi ne, %9, %c0_i32_6 : i32
    scf.if %10 {
      %cst_9 = arith.constant dense<0.000000e+00> : vector<32xf32>
      %14 = vector.multi_reduction <add>, %7, %cst_9 [0] : vector<304x32xf32> to vector<32xf32>
      %15 = vector.shape_cast %14 : vector<32xf32> to vector<1x32xf32>
      %cst_10 = arith.constant 0.00328947371 : f32
      %16 = vector.broadcast %cst_10 : f32 to vector<1x32xf32>
      %17 = arith.mulf %15, %16 : vector<1x32xf32>
      %18 = vector.broadcast %17 : vector<1x32xf32> to vector<304x32xf32>
      %19 = arith.subf %7, %18 : vector<304x32xf32>
      %20 = arith.mulf %19, %19 : vector<304x32xf32>
      %cst_11 = arith.constant dense<0.000000e+00> : vector<32xf32>
      %21 = vector.multi_reduction <add>, %20, %cst_11 [0] : vector<304x32xf32> to vector<32xf32>
      %22 = vector.shape_cast %21 : vector<32xf32> to vector<1x32xf32>
      %23 = tpu.iota {dimensions = array<i32: 0>} : vector<8x32xi32>
      %c0_i32_12 = arith.constant 0 : i32
      %24 = vector.broadcast %c0_i32_12 : i32 to vector<8x32xi32>
      %25 = arith.cmpi eq, %23, %24 : vector<8x32xi32>
      %26 = vector.shape_cast %15 : vector<1x32xf32> to vector<1x32xf32>
      %27 = vector.broadcast %26 : vector<1x32xf32> to vector<8x32xf32>
      %c1_i32 = arith.constant 1 : i32
      %28 = vector.broadcast %c1_i32 : i32 to vector<8x32xi32>
      %29 = arith.cmpi eq, %23, %28 : vector<8x32xi32>
      %30 = vector.shape_cast %22 : vector<1x32xf32> to vector<1x32xf32>
      %31 = vector.broadcast %30 : vector<1x32xf32> to vector<8x32xf32>
      %cst_13 = arith.constant 0.000000e+00 : f32
      %32 = vector.broadcast %cst_13 : f32 to vector<8x32xf32>
      %33 = arith.select %29, %31, %32 : vector<8x32xi1>, vector<8x32xf32>
      %34 = arith.select %25, %27, %33 : vector<8x32xi1>, vector<8x32xf32>
      %35 = vector.shape_cast %34 : vector<8x32xf32> to vector<1x8x32xf32>
      %c0_14 = arith.constant 0 : index
      %c0_15 = arith.constant 0 : index
      %c0_16 = arith.constant 0 : index
      %36 = vector.load %arg4[%c0_14, %c0_15, %c0_16] : memref<1x8x32xf32, #tpu.memory_space<vmem>>, vector<1x8x32xf32>
      tpu.vector_store %arg4[%c0_14, %c0_15, %c0_16], %35 {strides = array<i32>} : memref<1x8x32xf32, #tpu.memory_space<vmem>>, vector<1x8x32xf32>,
    } else {
    }
    %c0_i32_7 = arith.constant 0 : i32
    %11 = arith.cmpi eq, %arg0, %c0_i32_7 : i32
    %12 = arith.extui %11 : i1 to i32
    %c0_i32_8 = arith.constant 0 : i32
    %13 = arith.cmpi ne, %12, %c0_i32_8 : i32
    scf.if %13 {
      %14 = tpu.iota {dimensions = array<i32: 0>} : vector<304x1xi32>
      %c300_i32 = arith.constant 300 : i32
      %15 = vector.broadcast %c300_i32 : i32 to vector<304x1xi32>
      %16 = arith.cmpi slt, %14, %15 : vector<304x1xi32>
      %cst_9 = arith.constant 0.000000e+00 : f32
      %17 = vector.shape_cast %16 : vector<304x1xi1> to vector<304x1xi1>
      %18 = vector.broadcast %17 : vector<304x1xi1> to vector<304x32xi1>
      %19 = vector.broadcast %cst_9 : f32 to vector<304x32xf32>
      %20 = arith.select %18, %7, %19 : vector<304x32xi1>, vector<304x32xf32>
      %cst_10 = arith.constant dense<0.000000e+00> : vector<32xf32>
      %21 = vector.multi_reduction <add>, %20, %cst_10 [0] : vector<304x32xf32> to vector<32xf32>
      %22 = vector.shape_cast %21 : vector<32xf32> to vector<1x32xf32>
      %cst_11 = arith.constant 0.00333333341 : f32
      %23 = vector.broadcast %cst_11 : f32 to vector<1x32xf32>
      %24 = arith.mulf %22, %23 : vector<1x32xf32>
      %25 = vector.broadcast %24 : vector<1x32xf32> to vector<304x32xf32>
      %26 = arith.subf %7, %25 : vector<304x32xf32>
      %cst_12 = arith.constant 0.000000e+00 : f32
      %27 = vector.shape_cast %16 : vector<304x1xi1> to vector<304x1xi1>
      %28 = vector.broadcast %27 : vector<304x1xi1> to vector<304x32xi1>
      %29 = vector.broadcast %cst_12 : f32 to vector<304x32xf32>
      %30 = arith.select %28, %26, %29 : vector<304x32xi1>, vector<304x32xf32>
      %31 = arith.mulf %30, %30 : vector<304x32xf32>
      %cst_13 = arith.constant dense<0.000000e+00> : vector<32xf32>
      %32 = vector.multi_reduction <add>, %31, %cst_13 [0] : vector<304x32xf32> to vector<32xf32>
      %33 = vector.shape_cast %32 : vector<32xf32> to vector<1x32xf32>
      %34 = tpu.iota {dimensions = array<i32: 0>} : vector<8x32xi32>
      %c0_i32_14 = arith.constant 0 : i32
      %35 = vector.broadcast %c0_i32_14 : i32 to vector<8x32xi32>
      %36 = arith.cmpi eq, %34, %35 : vector<8x32xi32>
      %37 = vector.shape_cast %22 : vector<1x32xf32> to vector<1x32xf32>
      %38 = vector.broadcast %37 : vector<1x32xf32> to vector<8x32xf32>
      %c1_i32 = arith.constant 1 : i32
      %39 = vector.broadcast %c1_i32 : i32 to vector<8x32xi32>
      %40 = arith.cmpi eq, %34, %39 : vector<8x32xi32>
      %41 = vector.shape_cast %33 : vector<1x32xf32> to vector<1x32xf32>
      %42 = vector.broadcast %41 : vector<1x32xf32> to vector<8x32xf32>
      %cst_15 = arith.constant 0.000000e+00 : f32
      %43 = vector.broadcast %cst_15 : f32 to vector<8x32xf32>
      %44 = arith.select %40, %42, %43 : vector<8x32xi1>, vector<8x32xf32>
      %45 = arith.select %36, %38, %44 : vector<8x32xi1>, vector<8x32xf32>
      %46 = vector.shape_cast %45 : vector<8x32xf32> to vector<1x8x32xf32>
      %c0_16 = arith.constant 0 : index
      %c0_17 = arith.constant 0 : index
      %c0_18 = arith.constant 0 : index
      %47 = vector.load %arg4[%c0_16, %c0_17, %c0_18] : memref<1x8x32xf32, #tpu.memory_space<vmem>>, vector<1x8x32xf32>
      tpu.vector_store %arg4[%c0_16, %c0_17, %c0_18], %46 {strides = array<i32>} : memref<1x8x32xf32, #tpu.memory_space<vmem>>, vector<1x8x32xf32>,
    } else {
    }
    return
  }
  func.func @transform_0(%arg0: i32) -> (i32, i32) {
    %c0_i32 = arith.constant 0 : i32
    %c0_i32_0 = arith.constant 0 : i32
    return %arg0, %c0_i32 : i32, i32
  }
  func.func @transform_1(%arg0: i32) -> (i32, i32) {
    %c0_i32 = arith.constant 0 : i32
    %c0_i32_0 = arith.constant 0 : i32
    %c0_i32_1 = arith.constant 0 : i32
    return %c0_i32, %c0_i32_0 : i32, i32
  }
  func.func @transform_2(%arg0: i32) -> (i32, i32) {
    %c0_i32 = arith.constant 0 : i32
    %c0_i32_0 = arith.constant 0 : i32
    %c0_i32_1 = arith.constant 0 : i32
    return %c0_i32, %c0_i32_0 : i32, i32
  }
  func.func @transform_3(%arg0: i32) -> (i32, i32, i32) {
    %c0_i32 = arith.constant 0 : i32
    %c0_i32_0 = arith.constant 0 : i32
    %c0_i32_1 = arith.constant 0 : i32
    return %arg0, %c0_i32, %c0_i32_0 : i32, i32, i32
  }
}

</mosaic_0001>

<llo_original>
// kernel: tpu_custom_call.1
$region0: #{tpu_custom_call.1}
  #allocation0 [shape = 'u32[]', space=smem, size = 0x4, offset = 0x4, fixed_abs, tag = 'smem constant byte address 0x4 - core index']
  #allocation1 [shape = 'u32[144,128]{1,0:T(1,128)}', space=vmem, size = 0x12000, scoped, tag = 'internal scratch']
  %s0 = inlined_call_operand.vmem [shape: f32[304,16], index: 0, kind: input, shape index: {}]
  %s1 = inlined_call_operand.vmem [shape: f32[16,32], index: 1, kind: input, shape index: {}]
  %s2 = inlined_call_operand.vmem [shape: f32[1,32], index: 2, kind: input, shape index: {}]
  %s3 = inlined_call_operand.hbm [shape: f32[1,8,32], index: 3, kind: output, shape index: {}]
  %s4 = sld [smem:[#allocation0]]
  $region30: #{tpu_custom_call.1} parent=0
    _
  %s6 = ssub.s32 1, %s4
  %s7 = scalar_select 0, %s6, %s4
  $region1: #{tpu_custom_call.1} parent=0
    #allocation2 [shape = 'u8[4096]{0}', space=vmem, size = 0x1000, scoped, tag = 'output window, operand 0, single buffered']
    #allocation3 [shape = 's32[1]{0}', space=sflag, size = 0x4, scoped, tag = 'scoped memory for tpu_custom_call.1']
    %8 = vsyncpa [#allocation3], 0
    // Predicated region
    $region2: #{tpu_custom_call.1} parent=1 // pred_check
      _
    $region3: #{tpu_custom_call.1} parent=1 // pred_check_branch
      %10 = sbr.rel (0) target = $region5
    $region4: #{tpu_custom_call.1} parent=1 // pred_region
      _
    $region5: #{tpu_custom_call.1} parent=1 // pred_fallthru
      _
    // Predicated region
    $region6: #{tpu_custom_call.1} parent=1 // pred_check
      _
    $region7: #{tpu_custom_call.1} parent=1 // pred_check_branch
      %12 = sbr.rel (0) target = $region9
    $region8: #{tpu_custom_call.1} parent=1 // pred_region
      _
    $region9: #{tpu_custom_call.1} parent=1 // pred_fallthru
      _
    // Predicated region
    $region10: #{tpu_custom_call.1} parent=1 // pred_check
      _
    $region11: #{tpu_custom_call.1} parent=1 // pred_check_branch
      %14 = sbr.rel (0) target = $region13
    $region12: #{tpu_custom_call.1} parent=1 // pred_region
      _
    $region13: #{tpu_custom_call.1} parent=1 // pred_fallthru
      _
    %v15 = vld [vmem:[%s0] sm:$0xff]
    %v16 = vld [vmem:[%s0 + $0x8] sm:$0xff]
    %v17 = vld [vmem:[%s0 + $0x10] sm:$0xff]
    %v18 = vld [vmem:[%s0 + $0x18] sm:$0xff]
    %v19 = vld [vmem:[%s0 + $0x20] sm:$0xff]
    %v20 = vld [vmem:[%s0 + $0x28] sm:$0xff]
    %v21 = vld [vmem:[%s0 + $0x30] sm:$0xff]
    %v22 = vld [vmem:[%s0 + $0x38] sm:$0xff]
    %v23 = vld [vmem:[%s0 + $0x40] sm:$0xff]
    %v24 = vld [vmem:[%s0 + $0x48] sm:$0xff]
    %v25 = vld [vmem:[%s0 + $0x50] sm:$0xff]
    %v26 = vld [vmem:[%s0 + $0x58] sm:$0xff]
    %v27 = vld [vmem:[%s0 + $0x60] sm:$0xff]
    %v28 = vld [vmem:[%s0 + $0x68] sm:$0xff]
    %v29 = vld [vmem:[%s0 + $0x70] sm:$0xff]
    %v30 = vld [vmem:[%s0 + $0x78] sm:$0xff]
    %v31 = vld [vmem:[%s0 + $0x80] sm:$0xff]
    %v32 = vld [vmem:[%s0 + $0x88] sm:$0xff]
    %v33 = vld [vmem:[%s0 + $0x90] sm:$0xff]
    %v34 = vld [vmem:[%s0 + $0x98] sm:$0xff]
    %v35 = vld [vmem:[%s0 + $0xa0] sm:$0xff]
    %v36 = vld [vmem:[%s0 + $0xa8] sm:$0xff]
    %v37 = vld [vmem:[%s0 + $0xb0] sm:$0xff]
    %v38 = vld [vmem:[%s0 + $0xb8] sm:$0xff]
    %v39 = vld [vmem:[%s0 + $0xc0] sm:$0xff]
    %v40 = vld [vmem:[%s0 + $0xc8] sm:$0xff]
    %v41 = vld [vmem:[%s0 + $0xd0] sm:$0xff]
    %v42 = vld [vmem:[%s0 + $0xd8] sm:$0xff]
    %v43 = vld [vmem:[%s0 + $0xe0] sm:$0xff]
    %v44 = vld [vmem:[%s0 + $0xe8] sm:$0xff]
    %v45 = vld [vmem:[%s0 + $0xf0] sm:$0xff]
    %v46 = vld [vmem:[%s0 + $0xf8] sm:$0xff]
    %v47 = vld [vmem:[%s0 + $0x100] sm:$0xff]
    %v48 = vld [vmem:[%s0 + $0x108] sm:$0xff]
    %v49 = vld [vmem:[%s0 + $0x110] sm:$0xff]
    %v50 = vld [vmem:[%s0 + $0x118] sm:$0xff]
    %v51 = vld [vmem:[%s0 + $0x120] sm:$0xff]
    %v52 = vld [vmem:[%s0 + $0x128] sm:$0xff]
    %v53 = vld [vmem:[%s1] sm:$0xff]
    %v54 = vld [vmem:[%s1 + $0x8] sm:$0xff]
    %v55 = vld [vmem:[%s2] sm:$0x1]
    %v57 = vlaneseq
    %v58 = vshrl.u32 %v57, 7
    %v59 = vsub.s32 0, %v58
    %v60 = vrot.slane %v55, %v59
    %vm62 = vcmask 130048
    %v64 = vsel %vm62, %v15, 0
    %v67 = vsel %vm62, %v16, 0
    %v70 = vsel %vm62, %v17, 0
    %v73 = vsel %vm62, %v18, 0
    %v76 = vsel %vm62, %v19, 0
    %v79 = vsel %vm62, %v20, 0
    %v82 = vsel %vm62, %v21, 0
    %v85 = vsel %vm62, %v22, 0
    %v88 = vsel %vm62, %v23, 0
    %v91 = vsel %vm62, %v24, 0
    %v94 = vsel %vm62, %v25, 0
    %v97 = vsel %vm62, %v26, 0
    %v100 = vsel %vm62, %v27, 0
    %v103 = vsel %vm62, %v28, 0
    %v106 = vsel %vm62, %v29, 0
    %v109 = vsel %vm62, %v30, 0
    %v112 = vsel %vm62, %v31, 0
    %v115 = vsel %vm62, %v32, 0
    %v118 = vsel %vm62, %v33, 0
    %v121 = vsel %vm62, %v34, 0
    %v124 = vsel %vm62, %v35, 0
    %v127 = vsel %vm62, %v36, 0
    %v130 = vsel %vm62, %v37, 0
    %v133 = vsel %vm62, %v38, 0
    %v136 = vsel %vm62, %v39, 0
    %v139 = vsel %vm62, %v40, 0
    %v142 = vsel %vm62, %v41, 0
    %v145 = vsel %vm62, %v42, 0
    %v148 = vsel %vm62, %v43, 0
    %v151 = vsel %vm62, %v44, 0
    %v154 = vsel %vm62, %v45, 0
    %v157 = vsel %vm62, %v46, 0
    %v160 = vsel %vm62, %v47, 0
    %v163 = vsel %vm62, %v48, 0
    %v166 = vsel %vm62, %v49, 0
    %v169 = vsel %vm62, %v50, 0
    %v172 = vsel %vm62, %v51, 0
    %v175 = vsel %vm62, %v52, 0
    %177 = vmatprep.subr.mxu0 0.0
    %178 = vmatpush1.msra.mxu0 0.0
    %179 = vmatprep.subr.mxu0 0.0
    %180 = vmatpush1.msra.mxu0 0.0
    %181 = vmatprep.subr.mxu0 0.0
    %182 = vmatpush1.msra.mxu0 0.0
    %183 = vmatprep.subr.mxu0 0.0
    %184 = vmatpush1.msra.mxu0 0.0
    %185 = vmatprep.subr.mxu0 0.0
    %186 = vmatpush1.msra.mxu0 0.0
    %187 = vmatprep.subr.mxu0 0.0
    %188 = vmatpush1.msra.mxu0 0.0
    %189 = vmatprep.subr.mxu0 0.0
    %190 = vmatpush1.msra.mxu0 0.0
    %191 = vmatprep.subr.mxu0 0.0
    %192 = vmatpush1.msra.mxu0 0.0
    %193 = vmatprep.subr.mxu0 0.0
    %194 = vmatpush1.msra.mxu0 0.0
    %195 = vmatprep.subr.mxu0 0.0
    %196 = vmatpush1.msra.mxu0 0.0
    %197 = vmatprep.subr.mxu0 0.0
    %198 = vmatpush1.msra.mxu0 0.0
    %199 = vmatprep.subr.mxu0 0.0
    %200 = vmatpush1.msra.mxu0 0.0
    %201 = vmatprep.subr.mxu0 0.0
    %202 = vmatpush1.msra.mxu0 0.0
    %203 = vmatprep.subr.mxu0 0.0
    %204 = vmatpush1.msra.mxu0 0.0
    %205 = vmatprep.subr.mxu0 0.0
    %206 = vmatpush1.msra.mxu0 %v54
    %207 = vmatprep.subr.mxu0 0.0
    %208 = vmatpush1.msra.mxu0 %v53
    %209 = vmatprep.subr.mxu0 0.0
    %210 = vmatpush2.msra.mxu0 0.0
    %211 = vmatprep.subr.mxu0 0.0
    %212 = vmatpush2.msra.mxu0 0.0
    %213 = vmatprep.subr.mxu0 0.0
    %214 = vmatpush2.msra.mxu0 0.0
    %215 = vmatprep.subr.mxu0 0.0
    %216 = vmatpush2.msra.mxu0 0.0
    %217 = vmatprep.subr.mxu0 0.0
    %218 = vmatpush2.msra.mxu0 0.0
    %219 = vmatprep.subr.mxu0 0.0
    %220 = vmatpush2.msra.mxu0 0.0
    %221 = vmatprep.subr.mxu0 0.0
    %222 = vmatpush2.msra.mxu0 0.0
    %223 = vmatprep.subr.mxu0 0.0
    %224 = vmatpush2.msra.mxu0 0.0
    %225 = vmatprep.subr.mxu0 0.0
    %226 = vmatpush2.msra.mxu0 0.0
    %227 = vmatprep.subr.mxu0 0.0
    %228 = vmatpush2.msra.mxu0 0.0
    %229 = vmatprep.subr.mxu0 0.0
    %230 = vmatpush2.msra.mxu0 0.0
    %231 = vmatprep.subr.mxu0 0.0
    %232 = vmatpush2.msra.mxu0 0.0
    %233 = vmatprep.subr.mxu0 0.0
    %234 = vmatpush2.msra.mxu0 0.0
    %235 = vmatprep.subr.mxu0 0.0
    %236 = vmatpush2.msra.mxu0 0.0
    %237 = vmatprep.subr.mxu0 0.0
    %238 = vmatpush2.msra.mxu0 0.0
    %239 = vmatprep.subr.mxu0 0.0
    %240 = vmatpush2.msra.mxu0 0.0
    %241 = vmatprep.mubr.f32.mxu0 0.0
    %242 = vmatmul.mubr.f32.gmra.mxu0 %v64
    %v243 = vpop.f32.mrf.mxu0
    %v244 = vadd.f32 %v60, %v243
    %v245 = vpop.f32.mrf.mxu0
    %246 = vmatprep.mubr.f32.mxu0 0.0
    %247 = vmatmul.mubr.f32.gmra.mxu0 %v67
    %v248 = vpop.f32.mrf.mxu0
    %v249 = vadd.f32 %v60, %v248
    %v250 = vpop.f32.mrf.mxu0
    %251 = vmatprep.mubr.f32.mxu0 0.0
    %252 = vmatmul.mubr.f32.gmra.mxu0 %v70
    %v253 = vpop.f32.mrf.mxu0
    %v254 = vadd.f32 %v60, %v253
    %v255 = vpop.f32.mrf.mxu0
    %256 = vmatprep.mubr.f32.mxu0 0.0
    %257 = vmatmul.mubr.f32.gmra.mxu0 %v73
    %v258 = vpop.f32.mrf.mxu0
    %v259 = vadd.f32 %v60, %v258
    %v260 = vpop.f32.mrf.mxu0
    %261 = vmatprep.mubr.f32.mxu0 0.0
    %262 = vmatmul.mubr.f32.gmra.mxu0 %v76
    %v263 = vpop.f32.mrf.mxu0
    %v264 = vadd.f32 %v60, %v263
    %v265 = vpop.f32.mrf.mxu0
    %266 = vmatprep.mubr.f32.mxu0 0.0
    %267 = vmatmul.mubr.f32.gmra.mxu0 %v79
    %v268 = vpop.f32.mrf.mxu0
    %v269 = vadd.f32 %v60, %v268
    %v270 = vpop.f32.mrf.mxu0
    %271 = vmatprep.mubr.f32.mxu0 0.0
    %272 = vmatmul.mubr.f32.gmra.mxu0 %v82
    %v273 = vpop.f32.mrf.mxu0
    %v274 = vadd.f32 %v60, %v273
    %v275 = vpop.f32.mrf.mxu0
    %276 = vmatprep.mubr.f32.mxu0 0.0
    %277 = vmatmul.mubr.f32.gmra.mxu0 %v85
    %v278 = vpop.f32.mrf.mxu0
    %v279 = vadd.f32 %v60, %v278
    %v280 = vpop.f32.mrf.mxu0
    %281 = vmatprep.mubr.f32.mxu0 0.0
    %282 = vmatmul.mubr.f32.gmra.mxu0 %v88
    %v283 = vpop.f32.mrf.mxu0
    %v284 = vadd.f32 %v60, %v283
    %v285 = vpop.f32.mrf.mxu0
    %286 = vmatprep.mubr.f32.mxu0 0.0
    %287 = vmatmul.mubr.f32.gmra.mxu0 %v91
    %v288 = vpop.f32.mrf.mxu0
    %v289 = vadd.f32 %v60, %v288
    %v290 = vpop.f32.mrf.mxu0
    %291 = vmatprep.mubr.f32.mxu0 0.0
    %292 = vmatmul.mubr.f32.gmra.mxu0 %v94
    %v293 = vpop.f32.mrf.mxu0
    %v294 = vadd.f32 %v60, %v293
    %v295 = vpop.f32.mrf.mxu0
    %296 = vmatprep.mubr.f32.mxu0 0.0
    %297 = vmatmul.mubr.f32.gmra.mxu0 %v97
    %v298 = vpop.f32.mrf.mxu0
    %v299 = vadd.f32 %v60, %v298
    %v300 = vpop.f32.mrf.mxu0
    %301 = vmatprep.mubr.f32.mxu0 0.0
    %302 = vmatmul.mubr.f32.gmra.mxu0 %v100
    %v303 = vpop.f32.mrf.mxu0
    %v304 = vadd.f32 %v60, %v303
    %v305 = vpop.f32.mrf.mxu0
    %306 = vmatprep.mubr.f32.mxu0 0.0
    %307 = vmatmul.mubr.f32.gmra.mxu0 %v103
    %v308 = vpop.f32.mrf.mxu0
    %v309 = vadd.f32 %v60, %v308
    %v310 = vpop.f32.mrf.mxu0
    %311 = vmatprep.mubr.f32.mxu0 0.0
    %312 = vmatmul.mubr.f32.gmra.mxu0 %v106
    %v313 = vpop.f32.mrf.mxu0
    %v314 = vadd.f32 %v60, %v313
    %v315 = vpop.f32.mrf.mxu0
    %316 = vmatprep.mubr.f32.mxu0 0.0
    %317 = vmatmul.mubr.f32.gmra.mxu0 %v109
    %v318 = vpop.f32.mrf.mxu0
    %v319 = vadd.f32 %v60, %v318
    %v320 = vpop.f32.mrf.mxu0
    %321 = vmatprep.mubr.f32.mxu0 0.0
    %322 = vmatmul.mubr.f32.gmra.mxu0 %v112
    %v323 = vpop.f32.mrf.mxu0
    %v324 = vadd.f32 %v60, %v323
    %v325 = vpop.f32.mrf.mxu0
    %326 = vmatprep.mubr.f32.mxu0 0.0
    %327 = vmatmul.mubr.f32.gmra.mxu0 %v115
    %v328 = vpop.f32.mrf.mxu0
    %v329 = vadd.f32 %v60, %v328
    %v330 = vpop.f32.mrf.mxu0
    %331 = vmatprep.mubr.f32.mxu0 0.0
    %332 = vmatmul.mubr.f32.gmra.mxu0 %v118
    %v333 = vpop.f32.mrf.mxu0
    %v334 = vadd.f32 %v60, %v333
    %v335 = vpop.f32.mrf.mxu0
    %336 = vmatprep.mubr.f32.mxu0 0.0
    %337 = vmatmul.mubr.f32.gmra.mxu0 %v121
    %v338 = vpop.f32.mrf.mxu0
    %v339 = vadd.f32 %v60, %v338
    %v340 = vpop.f32.mrf.mxu0
    %341 = vmatprep.mubr.f32.mxu0 0.0
    %342 = vmatmul.mubr.f32.gmra.mxu0 %v124
    %v343 = vpop.f32.mrf.mxu0
    %v344 = vadd.f32 %v60, %v343
    %v345 = vpop.f32.mrf.mxu0
    %346 = vmatprep.mubr.f32.mxu0 0.0
    %347 = vmatmul.mubr.f32.gmra.mxu0 %v127
    %v348 = vpop.f32.mrf.mxu0
    %v349 = vadd.f32 %v60, %v348
    %v350 = vpop.f32.mrf.mxu0
    %351 = vmatprep.mubr.f32.mxu0 0.0
    %352 = vmatmul.mubr.f32.gmra.mxu0 %v130
    %v353 = vpop.f32.mrf.mxu0
    %v354 = vadd.f32 %v60, %v353
    %v355 = vpop.f32.mrf.mxu0
    %356 = vmatprep.mubr.f32.mxu0 0.0
    %357 = vmatmul.mubr.f32.gmra.mxu0 %v133
    %v358 = vpop.f32.mrf.mxu0
    %v359 = vadd.f32 %v60, %v358
    %v360 = vpop.f32.mrf.mxu0
    %361 = vmatprep.mubr.f32.mxu0 0.0
    %362 = vmatmul.mubr.f32.gmra.mxu0 %v136
    %v363 = vpop.f32.mrf.mxu0
    %v364 = vadd.f32 %v60, %v363
    %v365 = vpop.f32.mrf.mxu0
    %366 = vmatprep.mubr.f32.mxu0 0.0
    %367 = vmatmul.mubr.f32.gmra.mxu0 %v139
    %v368 = vpop.f32.mrf.mxu0
    %v369 = vadd.f32 %v60, %v368
    %v370 = vpop.f32.mrf.mxu0
    %371 = vmatprep.mubr.f32.mxu0 0.0
    %372 = vmatmul.mubr.f32.gmra.mxu0 %v142
    %v373 = vpop.f32.mrf.mxu0
    %v374 = vadd.f32 %v60, %v373
    %v375 = vpop.f32.mrf.mxu0
    %376 = vmatprep.mubr.f32.mxu0 0.0
    %377 = vmatmul.mubr.f32.gmra.mxu0 %v145
    %v378 = vpop.f32.mrf.mxu0
    %v379 = vadd.f32 %v60, %v378
    %v380 = vpop.f32.mrf.mxu0
    %381 = vmatprep.mubr.f32.mxu0 0.0
    %382 = vmatmul.mubr.f32.gmra.mxu0 %v148
    %v383 = vpop.f32.mrf.mxu0
    %v384 = vadd.f32 %v60, %v383
    %v385 = vpop.f32.mrf.mxu0
    %386 = vmatprep.mubr.f32.mxu0 0.0
    %387 = vmatmul.mubr.f32.gmra.mxu0 %v151
    %v388 = vpop.f32.mrf.mxu0
    %v389 = vadd.f32 %v60, %v388
    %v390 = vpop.f32.mrf.mxu0
    %391 = vmatprep.mubr.f32.mxu0 0.0
    %392 = vmatmul.mubr.f32.gmra.mxu0 %v154
    %v393 = vpop.f32.mrf.mxu0
    %v394 = vadd.f32 %v60, %v393
    %v395 = vpop.f32.mrf.mxu0
    %396 = vmatprep.mubr.f32.mxu0 0.0
    %397 = vmatmul.mubr.f32.gmra.mxu0 %v157
    %v398 = vpop.f32.mrf.mxu0
    %v399 = vadd.f32 %v60, %v398
    %v400 = vpop.f32.mrf.mxu0
    %401 = vmatprep.mubr.f32.mxu0 0.0
    %402 = vmatmul.mubr.f32.gmra.mxu0 %v160
    %v403 = vpop.f32.mrf.mxu0
    %v404 = vadd.f32 %v60, %v403
    %v405 = vpop.f32.mrf.mxu0
    %406 = vmatprep.mubr.f32.mxu0 0.0
    %407 = vmatmul.mubr.f32.gmra.mxu0 %v163
    %v408 = vpop.f32.mrf.mxu0
    %v409 = vadd.f32 %v60, %v408
    %v410 = vpop.f32.mrf.mxu0
    %411 = vmatprep.mubr.f32.mxu0 0.0
    %412 = vmatmul.mubr.f32.gmra.mxu0 %v166
    %v413 = vpop.f32.mrf.mxu0
    %v414 = vadd.f32 %v60, %v413
    %v415 = vpop.f32.mrf.mxu0
    %416 = vmatprep.mubr.f32.mxu0 0.0
    %417 = vmatmul.mubr.f32.gmra.mxu0 %v169
    %v418 = vpop.f32.mrf.mxu0
    %v419 = vadd.f32 %v60, %v418
    %v420 = vpop.f32.mrf.mxu0
    %421 = vmatprep.mubr.f32.mxu0 0.0
    %422 = vmatmul.mubr.f32.gmra.mxu0 %v172
    %v423 = vpop.f32.mrf.mxu0
    %v424 = vadd.f32 %v60, %v423
    %v425 = vpop.f32.mrf.mxu0
    %426 = vmatprep.mubr.f32.mxu0 0.0
    %427 = vmatmul.mubr.f32.gmra.mxu0 %v175
    %v428 = vpop.f32.mrf.mxu0
    %v429 = vadd.f32 %v60, %v428
    %v430 = vpop.f32.mrf.mxu0
    %431 = vdwg.mxu0
    %v432 = vmax.f32 %v244, 0.0
    %v433 = vmax.f32 %v249, 0.0
    %v434 = vmax.f32 %v254, 0.0
    %v435 = vmax.f32 %v259, 0.0
    %v436 = vmax.f32 %v264, 0.0
    %v437 = vmax.f32 %v269, 0.0
    %v438 = vmax.f32 %v274, 0.0
    %v439 = vmax.f32 %v279, 0.0
    %v440 = vmax.f32 %v284, 0.0
    %v441 = vmax.f32 %v289, 0.0
    %v442 = vmax.f32 %v294, 0.0
    %v443 = vmax.f32 %v299, 0.0
    %v444 = vmax.f32 %v304, 0.0
    %v445 = vmax.f32 %v309, 0.0
    %v446 = vmax.f32 %v314, 0.0
    %v447 = vmax.f32 %v319, 0.0
    %v448 = vmax.f32 %v324, 0.0
    %v449 = vmax.f32 %v329, 0.0
    %v450 = vmax.f32 %v334, 0.0
    %v451 = vmax.f32 %v339, 0.0
    %v452 = vmax.f32 %v344, 0.0
    %v453 = vmax.f32 %v349, 0.0
    %v454 = vmax.f32 %v354, 0.0
    %v455 = vmax.f32 %v359, 0.0
    %v456 = vmax.f32 %v364, 0.0
    %v457 = vmax.f32 %v369, 0.0
    %v458 = vmax.f32 %v374, 0.0
    %v459 = vmax.f32 %v379, 0.0
    %v460 = vmax.f32 %v384, 0.0
    %v461 = vmax.f32 %v389, 0.0
    %v462 = vmax.f32 %v394, 0.0
    %v463 = vmax.f32 %v399, 0.0
    %v464 = vmax.f32 %v404, 0.0
    %v465 = vmax.f32 %v409, 0.0
    %v466 = vmax.f32 %v414, 0.0
    %v467 = vmax.f32 %v419, 0.0
    %v468 = vmax.f32 %v424, 0.0
    %v469 = vmax.f32 %v429, 0.0
    %p470 = scmp.ne.s32.totalorder 0, 0
    // Predicated region
    $region14: #{tpu_custom_call.1} parent=1 // pred_check
      %p471 = pneg %p470
    $region15: #{tpu_custom_call.1} parent=1 // pred_check_branch
      %473 = sbr.rel (%p471) target = $region17
    $region16: #{tpu_custom_call.1} parent=1 // pred_region
      %vm474 = vcmask 261120
      %v475 = vsel %vm474, %v432, 0.0
      %v476 = vsel %vm474, %v433, 0.0
      %v477 = vadd.f32 %v475, %v476
      %v478 = vsel %vm474, %v434, 0.0
      %v479 = vadd.f32 %v477, %v478
      %v480 = vsel %vm474, %v435, 0.0
      %v481 = vadd.f32 %v479, %v480
      %v482 = vsel %vm474, %v436, 0.0
      %v483 = vadd.f32 %v481, %v482
      %v484 = vsel %vm474, %v437, 0.0
      %v485 = vadd.f32 %v483, %v484
      %v486 = vsel %vm474, %v438, 0.0
      %v487 = vadd.f32 %v485, %v486
      %v488 = vsel %vm474, %v439, 0.0
      %v489 = vadd.f32 %v487, %v488
      %v490 = vsel %vm474, %v440, 0.0
      %v491 = vadd.f32 %v489, %v490
      %v492 = vsel %vm474, %v441, 0.0
      %v493 = vadd.f32 %v491, %v492
      %v494 = vsel %vm474, %v442, 0.0
      %v495 = vadd.f32 %v493, %v494
      %v496 = vsel %vm474, %v443, 0.0
      %v497 = vadd.f32 %v495, %v496
      %v498 = vsel %vm474, %v444, 0.0
      %v499 = vadd.f32 %v497, %v498
      %v500 = vsel %vm474, %v445, 0.0
      %v501 = vadd.f32 %v499, %v500
      %v502 = vsel %vm474, %v446, 0.0
      %v503 = vadd.f32 %v501, %v502
      %v504 = vsel %vm474, %v447, 0.0
      %v505 = vadd.f32 %v503, %v504
      %v506 = vsel %vm474, %v448, 0.0
      %v507 = vadd.f32 %v505, %v506
      %v508 = vsel %vm474, %v449, 0.0
      %v509 = vadd.f32 %v507, %v508
      %v510 = vsel %vm474, %v450, 0.0
      %v511 = vadd.f32 %v509, %v510
      %v512 = vsel %vm474, %v451, 0.0
      %v513 = vadd.f32 %v511, %v512
      %v514 = vsel %vm474, %v452, 0.0
      %v515 = vadd.f32 %v513, %v514
      %v516 = vsel %vm474, %v453, 0.0
      %v517 = vadd.f32 %v515, %v516
      %v518 = vsel %vm474, %v454, 0.0
      %v519 = vadd.f32 %v517, %v518
      %v520 = vsel %vm474, %v455, 0.0
      %v521 = vadd.f32 %v519, %v520
      %v522 = vsel %vm474, %v456, 0.0
      %v523 = vadd.f32 %v521, %v522
      %v524 = vsel %vm474, %v457, 0.0
      %v525 = vadd.f32 %v523, %v524
      %v526 = vsel %vm474, %v458, 0.0
      %v527 = vadd.f32 %v525, %v526
      %v528 = vsel %vm474, %v459, 0.0
      %v529 = vadd.f32 %v527, %v528
      %v530 = vsel %vm474, %v460, 0.0
      %v531 = vadd.f32 %v529, %v530
      %v532 = vsel %vm474, %v461, 0.0
      %v533 = vadd.f32 %v531, %v532
      %v534 = vsel %vm474, %v462, 0.0
      %v535 = vadd.f32 %v533, %v534
      %v536 = vsel %vm474, %v463, 0.0
      %v537 = vadd.f32 %v535, %v536
      %v538 = vsel %vm474, %v464, 0.0
      %v539 = vadd.f32 %v537, %v538
      %v540 = vsel %vm474, %v465, 0.0
      %v541 = vadd.f32 %v539, %v540
      %v542 = vsel %vm474, %v466, 0.0
      %v543 = vadd.f32 %v541, %v542
      %v544 = vsel %vm474, %v467, 0.0
      %v545 = vadd.f32 %v543, %v544
      %v546 = vsel %vm474, %v468, 0.0
      %v547 = vadd.f32 %v545, %v546
      %v548 = vsel %vm474, %v469, 0.0
      %v549 = vadd.f32 %v547, %v548
      %v550 = vrot.slane %v549, 4
      %v551 = vadd.f32 %v549, %v550
      %v552 = vrot.slane %v551, 2
      %v553 = vadd.f32 %v551, %v552
      %v554 = vrot.slane %v553, 1
      %v555 = vadd.f32 %v553, %v554
      %v556 = vmul.f32 %v555, 0.0032894737
      %v557 = vsub.f32 %v432, %v556
      %v558 = vsub.f32 %v433, %v556
      %v559 = vsub.f32 %v434, %v556
      %v560 = vsub.f32 %v435, %v556
      %v561 = vsub.f32 %v436, %v556
      %v562 = vsub.f32 %v437, %v556
      %v563 = vsub.f32 %v438, %v556
      %v564 = vsub.f32 %v439, %v556
      %v565 = vsub.f32 %v440, %v556
      %v566 = vsub.f32 %v441, %v556
      %v567 = vsub.f32 %v442, %v556
      %v568 = vsub.f32 %v443, %v556
      %v569 = vsub.f32 %v444, %v556
      %v570 = vsub.f32 %v445, %v556
      %v571 = vsub.f32 %v446, %v556
      %v572 = vsub.f32 %v447, %v556
      %v573 = vsub.f32 %v448, %v556
      %v574 = vsub.f32 %v449, %v556
      %v575 = vsub.f32 %v450, %v556
      %v576 = vsub.f32 %v451, %v556
      %v577 = vsub.f32 %v452, %v556
      %v578 = vsub.f32 %v453, %v556
      %v579 = vsub.f32 %v454, %v556
      %v580 = vsub.f32 %v455, %v556
      %v581 = vsub.f32 %v456, %v556
      %v582 = vsub.f32 %v457, %v556
      %v583 = vsub.f32 %v458, %v556
      %v584 = vsub.f32 %v459, %v556
      %v585 = vsub.f32 %v460, %v556
      %v586 = vsub.f32 %v461, %v556
      %v587 = vsub.f32 %v462, %v556
      %v588 = vsub.f32 %v463, %v556
      %v589 = vsub.f32 %v464, %v556
      %v590 = vsub.f32 %v465, %v556
      %v591 = vsub.f32 %v466, %v556
      %v592 = vsub.f32 %v467, %v556
      %v593 = vsub.f32 %v468, %v556
      %v594 = vsub.f32 %v469, %v556
      %v595 = vmul.f32 %v557, %v557
      %v596 = vmul.f32 %v558, %v558
      %v597 = vmul.f32 %v559, %v559
      %v598 = vmul.f32 %v560, %v560
      %v599 = vmul.f32 %v561, %v561
      %v600 = vmul.f32 %v562, %v562
      %v601 = vmul.f32 %v563, %v563
      %v602 = vmul.f32 %v564, %v564
      %v603 = vmul.f32 %v565, %v565
      %v604 = vmul.f32 %v566, %v566
      %v605 = vmul.f32 %v567, %v567
      %v606 = vmul.f32 %v568, %v568
      %v607 = vmul.f32 %v569, %v569
      %v608 = vmul.f32 %v570, %v570
      %v609 = vmul.f32 %v571, %v571
      %v610 = vmul.f32 %v572, %v572
      %v611 = vmul.f32 %v573, %v573
      %v612 = vmul.f32 %v574, %v574
      %v613 = vmul.f32 %v575, %v575
      %v614 = vmul.f32 %v576, %v576
      %v615 = vmul.f32 %v577, %v577
      %v616 = vmul.f32 %v578, %v578
      %v617 = vmul.f32 %v579, %v579
      %v618 = vmul.f32 %v580, %v580
      %v619 = vmul.f32 %v581, %v581
      %v620 = vmul.f32 %v582, %v582
      %v621 = vmul.f32 %v583, %v583
      %v622 = vmul.f32 %v584, %v584
      %v623 = vmul.f32 %v585, %v585
      %v624 = vmul.f32 %v586, %v586
      %v625 = vmul.f32 %v587, %v587
      %v626 = vmul.f32 %v588, %v588
      %v627 = vmul.f32 %v589, %v589
      %v628 = vmul.f32 %v590, %v590
      %v629 = vmul.f32 %v591, %v591
      %v630 = vmul.f32 %v592, %v592
      %v631 = vmul.f32 %v593, %v593
      %v632 = vmul.f32 %v594, %v594
      %v633 = vsel %vm474, %v595, 0.0
      %v634 = vsel %vm474, %v596, 0.0
      %v635 = vadd.f32 %v633, %v634
      %v636 = vsel %vm474, %v597, 0.0
      %v637 = vadd.f32 %v635, %v636
      %v638 = vsel %vm474, %v598, 0.0
      %v639 = vadd.f32 %v637, %v638
      %v640 = vsel %vm474, %v599, 0.0
      %v641 = vadd.f32 %v639, %v640
      %v642 = vsel %vm474, %v600, 0.0
      %v643 = vadd.f32 %v641, %v642
      %v644 = vsel %vm474, %v601, 0.0
      %v645 = vadd.f32 %v643, %v644
      %v646 = vsel %vm474, %v602, 0.0
      %v647 = vadd.f32 %v645, %v646
      %v648 = vsel %vm474, %v603, 0.0
      %v649 = vadd.f32 %v647, %v648
      %v650 = vsel %vm474, %v604, 0.0
      %v651 = vadd.f32 %v649, %v650
      %v652 = vsel %vm474, %v605, 0.0
      %v653 = vadd.f32 %v651, %v652
      %v654 = vsel %vm474, %v606, 0.0
      %v655 = vadd.f32 %v653, %v654
      %v656 = vsel %vm474, %v607, 0.0
      %v657 = vadd.f32 %v655, %v656
      %v658 = vsel %vm474, %v608, 0.0
      %v659 = vadd.f32 %v657, %v658
      %v660 = vsel %vm474, %v609, 0.0
      %v661 = vadd.f32 %v659, %v660
      %v662 = vsel %vm474, %v610, 0.0
      %v663 = vadd.f32 %v661, %v662
      %v664 = vsel %vm474, %v611, 0.0
      %v665 = vadd.f32 %v663, %v664
      %v666 = vsel %vm474, %v612, 0.0
      %v667 = vadd.f32 %v665, %v666
      %v668 = vsel %vm474, %v613, 0.0
      %v669 = vadd.f32 %v667, %v668
      %v670 = vsel %vm474, %v614, 0.0
      %v671 = vadd.f32 %v669, %v670
      %v672 = vsel %vm474, %v615, 0.0
      %v673 = vadd.f32 %v671, %v672
      %v674 = vsel %vm474, %v616, 0.0
      %v675 = vadd.f32 %v673, %v674
      %v676 = vsel %vm474, %v617, 0.0
      %v677 = vadd.f32 %v675, %v676
      %v678 = vsel %vm474, %v618, 0.0
      %v679 = vadd.f32 %v677, %v678
      %v680 = vsel %vm474, %v619, 0.0
      %v681 = vadd.f32 %v679, %v680
      %v682 = vsel %vm474, %v620, 0.0
      %v683 = vadd.f32 %v681, %v682
      %v684 = vsel %vm474, %v621, 0.0
      %v685 = vadd.f32 %v683, %v684
      %v686 = vsel %vm474, %v622, 0.0
      %v687 = vadd.f32 %v685, %v686
      %v688 = vsel %vm474, %v623, 0.0
      %v689 = vadd.f32 %v687, %v688
      %v690 = vsel %vm474, %v624, 0.0
      %v691 = vadd.f32 %v689, %v690
      %v692 = vsel %vm474, %v625, 0.0
      %v693 = vadd.f32 %v691, %v692
      %v694 = vsel %vm474, %v626, 0.0
      %v695 = vadd.f32 %v693, %v694
      %v696 = vsel %vm474, %v627, 0.0
      %v697 = vadd.f32 %v695, %v696
      %v698 = vsel %vm474, %v628, 0.0
      %v699 = vadd.f32 %v697, %v698
      %v700 = vsel %vm474, %v629, 0.0
      %v701 = vadd.f32 %v699, %v700
      %v702 = vsel %vm474, %v630, 0.0
      %v703 = vadd.f32 %v701, %v702
      %v704 = vsel %vm474, %v631, 0.0
      %v705 = vadd.f32 %v703, %v704
      %v706 = vsel %vm474, %v632, 0.0
      %v707 = vadd.f32 %v705, %v706
      %v708 = vrot.slane %v707, 4
      %v709 = vadd.f32 %v707, %v708
      %v710 = vrot.slane %v709, 2
      %v711 = vadd.f32 %v709, %v710
      %v712 = vrot.slane %v711, 1
      %v713 = vadd.f32 %v711, %v712
      %v714 = vlaneseq
      %v715 = vshrl.u32 %v714, 7
      %vm716 = vcmp.eq.s32.totalorder %v715, 0
      %vm717 = vcmp.eq.s32.totalorder %v715, 1
      %v718 = vsel %vm717, %v713, 0.0
      %v719 = vsel %vm716, %v555, %v718
      %720 = vst.msk [vmem:[#allocation2] sm:$0xff] %vm474, %v719
    $region17: #{tpu_custom_call.1} parent=1 // pred_fallthru
      _
    %p721 = scmp.eq.s32.totalorder 0, 0
    // Predicated region
    $region18: #{tpu_custom_call.1} parent=1 // pred_check
      %p722 = pneg %p721
    $region19: #{tpu_custom_call.1} parent=1 // pred_check_branch
      %724 = sbr.rel (%p722) target = $region21
    $region20: #{tpu_custom_call.1} parent=1 // pred_region
      %v725 = vlaneseq
      %v726 = vshrl.u32 %v725, 7
      %v727 = vadd.s32 %v726, 8
      %v728 = vadd.s32 %v726, 16
      %v729 = vadd.s32 %v726, 24
      %v730 = vadd.s32 %v726, 32
      %v731 = vadd.s32 %v726, 40
      %v732 = vadd.s32 %v726, 48
      %v733 = vadd.s32 %v726, 56
      %v734 = vadd.s32 %v726, 64
      %v735 = vadd.s32 %v726, 72
      %v736 = vadd.s32 %v726, 80
      %v737 = vadd.s32 %v726, 88
      %v738 = vadd.s32 %v726, 96
      %v739 = vadd.s32 %v726, 104
      %v740 = vadd.s32 %v726, 112
      %v741 = vadd.s32 %v726, 120
      %v742 = vadd.s32 %v726, 128
      %v743 = vadd.s32 %v726, 136
      %v744 = vadd.s32 %v726, 144
      %v745 = vadd.s32 %v726, 152
      %v746 = vadd.s32 %v726, 160
      %v747 = vadd.s32 %v726, 168
      %v748 = vadd.s32 %v726, 176
      %v749 = vadd.s32 %v726, 184
      %v750 = vadd.s32 %v726, 192
      %v751 = vadd.s32 %v726, 200
      %v752 = vadd.s32 %v726, 208
      %v753 = vadd.s32 %v726, 216
      %v754 = vadd.s32 %v726, 224
      %v755 = vadd.s32 %v726, 232
      %v756 = vadd.s32 %v726, 240
      %v757 = vadd.s32 %v726, 248
      %v758 = vadd.s32 %v726, 256
      %v759 = vadd.s32 %v726, 264
      %v760 = vadd.s32 %v726, 272
      %v761 = vadd.s32 %v726, 280
      %v762 = vadd.s32 %v726, 288
      %v763 = vadd.s32 %v726, 296
      %vm764 = vcmp.lt.s32.totalorder %v726, 300
      %vm765 = vcmp.lt.s32.totalorder %v727, 300
      %vm766 = vcmp.lt.s32.totalorder %v728, 300
      %vm767 = vcmp.lt.s32.totalorder %v729, 300
      %vm768 = vcmp.lt.s32.totalorder %v730, 300
      %vm769 = vcmp.lt.s32.totalorder %v731, 300
      %vm770 = vcmp.lt.s32.totalorder %v732, 300
      %vm771 = vcmp.lt.s32.totalorder %v733, 300
      %vm772 = vcmp.lt.s32.totalorder %v734, 300
      %vm773 = vcmp.lt.s32.totalorder %v735, 300
      %vm774 = vcmp.lt.s32.totalorder %v736, 300
      %vm775 = vcmp.lt.s32.totalorder %v737, 300
      %vm776 = vcmp.lt.s32.totalorder %v738, 300
      %vm777 = vcmp.lt.s32.totalorder %v739, 300
      %vm778 = vcmp.lt.s32.totalorder %v740, 300
      %vm779 = vcmp.lt.s32.totalorder %v741, 300
      %vm780 = vcmp.lt.s32.totalorder %v742, 300
      %vm781 = vcmp.lt.s32.totalorder %v743, 300
      %vm782 = vcmp.lt.s32.totalorder %v744, 300
      %vm783 = vcmp.lt.s32.totalorder %v745, 300
      %vm784 = vcmp.lt.s32.totalorder %v746, 300
      %vm785 = vcmp.lt.s32.totalorder %v747, 300
      %vm786 = vcmp.lt.s32.totalorder %v748, 300
      %vm787 = vcmp.lt.s32.totalorder %v749, 300
      %vm788 = vcmp.lt.s32.totalorder %v750, 300
      %vm789 = vcmp.lt.s32.totalorder %v751, 300
      %vm790 = vcmp.lt.s32.totalorder %v752, 300
      %vm791 = vcmp.lt.s32.totalorder %v753, 300
      %vm792 = vcmp.lt.s32.totalorder %v754, 300
      %vm793 = vcmp.lt.s32.totalorder %v755, 300
      %vm794 = vcmp.lt.s32.totalorder %v756, 300
      %vm795 = vcmp.lt.s32.totalorder %v757, 300
      %vm796 = vcmp.lt.s32.totalorder %v758, 300
      %vm797 = vcmp.lt.s32.totalorder %v759, 300
      %vm798 = vcmp.lt.s32.totalorder %v760, 300
      %vm799 = vcmp.lt.s32.totalorder %v761, 300
      %vm800 = vcmp.lt.s32.totalorder %v762, 300
      %vm801 = vcmp.lt.s32.totalorder %v763, 300
      %v802 = vsel %vm764, 1, 0
      %v803 = vsel %vm765, 1, 0
      %v804 = vsel %vm766, 1, 0
      %v805 = vsel %vm767, 1, 0
      %v806 = vsel %vm768, 1, 0
      %v807 = vsel %vm769, 1, 0
      %v808 = vsel %vm770, 1, 0
      %v809 = vsel %vm771, 1, 0
      %v810 = vsel %vm772, 1, 0
      %v811 = vsel %vm773, 1, 0
      %v812 = vsel %vm774, 1, 0
      %v813 = vsel %vm775, 1, 0
      %v814 = vsel %vm776, 1, 0
      %v815 = vsel %vm777, 1, 0
      %v816 = vsel %vm778, 1, 0
      %v817 = vsel %vm779, 1, 0
      %v818 = vsel %vm780, 1, 0
      %v819 = vsel %vm781, 1, 0
      %v820 = vsel %vm782, 1, 0
      %v821 = vsel %vm783, 1, 0
      %v822 = vsel %vm784, 1, 0
      %v823 = vsel %vm785, 1, 0
      %v824 = vsel %vm786, 1, 0
      %v825 = vsel %vm787, 1, 0
      %v826 = vsel %vm788, 1, 0
      %v827 = vsel %vm789, 1, 0
      %v828 = vsel %vm790, 1, 0
      %v829 = vsel %vm791, 1, 0
      %v830 = vsel %vm792, 1, 0
      %v831 = vsel %vm793, 1, 0
      %v832 = vsel %vm794, 1, 0
      %v833 = vsel %vm795, 1, 0
      %v834 = vsel %vm796, 1, 0
      %v835 = vsel %vm797, 1, 0
      %v836 = vsel %vm798, 1, 0
      %v837 = vsel %vm799, 1, 0
      %v838 = vsel %vm800, 1, 0
      %v839 = vsel %vm801, 1, 0
      %vm840 = vcmp.eq.s32.totalorder %v802, 1
      %vm841 = vcmp.eq.s32.totalorder %v803, 1
      %vm842 = vcmp.eq.s32.totalorder %v804, 1
      %vm843 = vcmp.eq.s32.totalorder %v805, 1
      %vm844 = vcmp.eq.s32.totalorder %v806, 1
      %vm845 = vcmp.eq.s32.totalorder %v807, 1
      %vm846 = vcmp.eq.s32.totalorder %v808, 1
      %vm847 = vcmp.eq.s32.totalorder %v809, 1
      %vm848 = vcmp.eq.s32.totalorder %v810, 1
      %vm849 = vcmp.eq.s32.totalorder %v811, 1
      %vm850 = vcmp.eq.s32.totalorder %v812, 1
      %vm851 = vcmp.eq.s32.totalorder %v813, 1
      %vm852 = vcmp.eq.s32.totalorder %v814, 1
      %vm853 = vcmp.eq.s32.totalorder %v815, 1
      %vm854 = vcmp.eq.s32.totalorder %v816, 1
      %vm855 = vcmp.eq.s32.totalorder %v817, 1
      %vm856 = vcmp.eq.s32.totalorder %v818, 1
      %vm857 = vcmp.eq.s32.totalorder %v819, 1
      %vm858 = vcmp.eq.s32.totalorder %v820, 1
      %vm859 = vcmp.eq.s32.totalorder %v821, 1
      %vm860 = vcmp.eq.s32.totalorder %v822, 1
      %vm861 = vcmp.eq.s32.totalorder %v823, 1
      %vm862 = vcmp.eq.s32.totalorder %v824, 1
      %vm863 = vcmp.eq.s32.totalorder %v825, 1
      %vm864 = vcmp.eq.s32.totalorder %v826, 1
      %vm865 = vcmp.eq.s32.totalorder %v827, 1
      %vm866 = vcmp.eq.s32.totalorder %v828, 1
      %vm867 = vcmp.eq.s32.totalorder %v829, 1
      %vm868 = vcmp.eq.s32.totalorder %v830, 1
      %vm869 = vcmp.eq.s32.totalorder %v831, 1
      %vm870 = vcmp.eq.s32.totalorder %v832, 1
      %vm871 = vcmp.eq.s32.totalorder %v833, 1
      %vm872 = vcmp.eq.s32.totalorder %v834, 1
      %vm873 = vcmp.eq.s32.totalorder %v835, 1
      %vm874 = vcmp.eq.s32.totalorder %v836, 1
      %vm875 = vcmp.eq.s32.totalorder %v837, 1
      %vm876 = vcmp.eq.s32.totalorder %v838, 1
      %vm877 = vcmp.eq.s32.totalorder %v839, 1
      %v878 = vsel %vm840, %v432, 0.0
      %v879 = vsel %vm841, %v433, 0.0
      %v880 = vsel %vm842, %v434, 0.0
      %v881 = vsel %vm843, %v435, 0.0
      %v882 = vsel %vm844, %v436, 0.0
      %v883 = vsel %vm845, %v437, 0.0
      %v884 = vsel %vm846, %v438, 0.0
      %v885 = vsel %vm847, %v439, 0.0
      %v886 = vsel %vm848, %v440, 0.0
      %v887 = vsel %vm849, %v441, 0.0
      %v888 = vsel %vm850, %v442, 0.0
      %v889 = vsel %vm851, %v443, 0.0
      %v890 = vsel %vm852, %v444, 0.0
      %v891 = vsel %vm853, %v445, 0.0
      %v892 = vsel %vm854, %v446, 0.0
      %v893 = vsel %vm855, %v447, 0.0
      %v894 = vsel %vm856, %v448, 0.0
      %v895 = vsel %vm857, %v449, 0.0
      %v896 = vsel %vm858, %v450, 0.0
      %v897 = vsel %vm859, %v451, 0.0
      %v898 = vsel %vm860, %v452, 0.0
      %v899 = vsel %vm861, %v453, 0.0
      %v900 = vsel %vm862, %v454, 0.0
      %v901 = vsel %vm863, %v455, 0.0
      %v902 = vsel %vm864, %v456, 0.0
      %v903 = vsel %vm865, %v457, 0.0
      %v904 = vsel %vm866, %v458, 0.0
      %v905 = vsel %vm867, %v459, 0.0
      %v906 = vsel %vm868, %v460, 0.0
      %v907 = vsel %vm869, %v461, 0.0
      %v908 = vsel %vm870, %v462, 0.0
      %v909 = vsel %vm871, %v463, 0.0
      %v910 = vsel %vm872, %v464, 0.0
      %v911 = vsel %vm873, %v465, 0.0
      %v912 = vsel %vm874, %v466, 0.0
      %v913 = vsel %vm875, %v467, 0.0
      %v914 = vsel %vm876, %v468, 0.0
      %v915 = vsel %vm877, %v469, 0.0
      %vm916 = vcmask 261120
      %v917 = vsel %vm916, %v878, 0.0
      %v918 = vsel %vm916, %v879, 0.0
      %v919 = vadd.f32 %v917, %v918
      %v920 = vsel %vm916, %v880, 0.0
      %v921 = vadd.f32 %v919, %v920
      %v922 = vsel %vm916, %v881, 0.0
      %v923 = vadd.f32 %v921, %v922
      %v924 = vsel %vm916, %v882, 0.0
      %v925 = vadd.f32 %v923, %v924
      %v926 = vsel %vm916, %v883, 0.0
      %v927 = vadd.f32 %v925, %v926
      %v928 = vsel %vm916, %v884, 0.0
      %v929 = vadd.f32 %v927, %v928
      %v930 = vsel %vm916, %v885, 0.0
      %v931 = vadd.f32 %v929, %v930
      %v932 = vsel %vm916, %v886, 0.0
      %v933 = vadd.f32 %v931, %v932
      %v934 = vsel %vm916, %v887, 0.0
      %v935 = vadd.f32 %v933, %v934
      %v936 = vsel %vm916, %v888, 0.0
      %v937 = vadd.f32 %v935, %v936
      %v938 = vsel %vm916, %v889, 0.0
      %v939 = vadd.f32 %v937, %v938
      %v940 = vsel %vm916, %v890, 0.0
      %v941 = vadd.f32 %v939, %v940
      %v942 = vsel %vm916, %v891, 0.0
      %v943 = vadd.f32 %v941, %v942
      %v944 = vsel %vm916, %v892, 0.0
      %v945 = vadd.f32 %v943, %v944
      %v946 = vsel %vm916, %v893, 0.0
      %v947 = vadd.f32 %v945, %v946
      %v948 = vsel %vm916, %v894, 0.0
      %v949 = vadd.f32 %v947, %v948
      %v950 = vsel %vm916, %v895, 0.0
      %v951 = vadd.f32 %v949, %v950
      %v952 = vsel %vm916, %v896, 0.0
      %v953 = vadd.f32 %v951, %v952
      %v954 = vsel %vm916, %v897, 0.0
      %v955 = vadd.f32 %v953, %v954
      %v956 = vsel %vm916, %v898, 0.0
      %v957 = vadd.f32 %v955, %v956
      %v958 = vsel %vm916, %v899, 0.0
      %v959 = vadd.f32 %v957, %v958
      %v960 = vsel %vm916, %v900, 0.0
      %v961 = vadd.f32 %v959, %v960
      %v962 = vsel %vm916, %v901, 0.0
      %v963 = vadd.f32 %v961, %v962
      %v964 = vsel %vm916, %v902, 0.0
      %v965 = vadd.f32 %v963, %v964
      %v966 = vsel %vm916, %v903, 0.0
      %v967 = vadd.f32 %v965, %v966
      %v968 = vsel %vm916, %v904, 0.0
      %v969 = vadd.f32 %v967, %v968
      %v970 = vsel %vm916, %v905, 0.0
      %v971 = vadd.f32 %v969, %v970
      %v972 = vsel %vm916, %v906, 0.0
      %v973 = vadd.f32 %v971, %v972
      %v974 = vsel %vm916, %v907, 0.0
      %v975 = vadd.f32 %v973, %v974
      %v976 = vsel %vm916, %v908, 0.0
      %v977 = vadd.f32 %v975, %v976
      %v978 = vsel %vm916, %v909, 0.0
      %v979 = vadd.f32 %v977, %v978
      %v980 = vsel %vm916, %v910, 0.0
      %v981 = vadd.f32 %v979, %v980
      %v982 = vsel %vm916, %v911, 0.0
      %v983 = vadd.f32 %v981, %v982
      %v984 = vsel %vm916, %v912, 0.0
      %v985 = vadd.f32 %v983, %v984
      %v986 = vsel %vm916, %v913, 0.0
      %v987 = vadd.f32 %v985, %v986
      %v988 = vsel %vm916, %v914, 0.0
      %v989 = vadd.f32 %v987, %v988
      %v990 = vsel %vm916, %v915, 0.0
      %v991 = vadd.f32 %v989, %v990
      %v992 = vrot.slane %v991, 4
      %v993 = vadd.f32 %v991, %v992
      %v994 = vrot.slane %v993, 2
      %v995 = vadd.f32 %v993, %v994
      %v996 = vrot.slane %v995, 1
      %v997 = vadd.f32 %v995, %v996
      %v998 = vmul.f32 %v997, 0.0033333334
      %v999 = vsub.f32 %v432, %v998
      %v1000 = vsub.f32 %v433, %v998
      %v1001 = vsub.f32 %v434, %v998
      %v1002 = vsub.f32 %v435, %v998
      %v1003 = vsub.f32 %v436, %v998
      %v1004 = vsub.f32 %v437, %v998
      %v1005 = vsub.f32 %v438, %v998
      %v1006 = vsub.f32 %v439, %v998
      %v1007 = vsub.f32 %v440, %v998
      %v1008 = vsub.f32 %v441, %v998
      %v1009 = vsub.f32 %v442, %v998
      %v1010 = vsub.f32 %v443, %v998
      %v1011 = vsub.f32 %v444, %v998
      %v1012 = vsub.f32 %v445, %v998
      %v1013 = vsub.f32 %v446, %v998
      %v1014 = vsub.f32 %v447, %v998
      %v1015 = vsub.f32 %v448, %v998
      %v1016 = vsub.f32 %v449, %v998
      %v1017 = vsub.f32 %v450, %v998
      %v1018 = vsub.f32 %v451, %v998
      %v1019 = vsub.f32 %v452, %v998
      %v1020 = vsub.f32 %v453, %v998
      %v1021 = vsub.f32 %v454, %v998
      %v1022 = vsub.f32 %v455, %v998
      %v1023 = vsub.f32 %v456, %v998
      %v1024 = vsub.f32 %v457, %v998
      %v1025 = vsub.f32 %v458, %v998
      %v1026 = vsub.f32 %v459, %v998
      %v1027 = vsub.f32 %v460, %v998
      %v1028 = vsub.f32 %v461, %v998
      %v1029 = vsub.f32 %v462, %v998
      %v1030 = vsub.f32 %v463, %v998
      %v1031 = vsub.f32 %v464, %v998
      %v1032 = vsub.f32 %v465, %v998
      %v1033 = vsub.f32 %v466, %v998
      %v1034 = vsub.f32 %v467, %v998
      %v1035 = vsub.f32 %v468, %v998
      %v1036 = vsub.f32 %v469, %v998
      %v1037 = vsel %vm840, %v999, 0.0
      %v1038 = vsel %vm841, %v1000, 0.0
      %v1039 = vsel %vm842, %v1001, 0.0
      %v1040 = vsel %vm843, %v1002, 0.0
      %v1041 = vsel %vm844, %v1003, 0.0
      %v1042 = vsel %vm845, %v1004, 0.0
      %v1043 = vsel %vm846, %v1005, 0.0
      %v1044 = vsel %vm847, %v1006, 0.0
      %v1045 = vsel %vm848, %v1007, 0.0
      %v1046 = vsel %vm849, %v1008, 0.0
      %v1047 = vsel %vm850, %v1009, 0.0
      %v1048 = vsel %vm851, %v1010, 0.0
      %v1049 = vsel %vm852, %v1011, 0.0
      %v1050 = vsel %vm853, %v1012, 0.0
      %v1051 = vsel %vm854, %v1013, 0.0
      %v1052 = vsel %vm855, %v1014, 0.0
      %v1053 = vsel %vm856, %v1015, 0.0
      %v1054 = vsel %vm857, %v1016, 0.0
      %v1055 = vsel %vm858, %v1017, 0.0
      %v1056 = vsel %vm859, %v1018, 0.0
      %v1057 = vsel %vm860, %v1019, 0.0
      %v1058 = vsel %vm861, %v1020, 0.0
      %v1059 = vsel %vm862, %v1021, 0.0
      %v1060 = vsel %vm863, %v1022, 0.0
      %v1061 = vsel %vm864, %v1023, 0.0
      %v1062 = vsel %vm865, %v1024, 0.0
      %v1063 = vsel %vm866, %v1025, 0.0
      %v1064 = vsel %vm867, %v1026, 0.0
      %v1065 = vsel %vm868, %v1027, 0.0
      %v1066 = vsel %vm869, %v1028, 0.0
      %v1067 = vsel %vm870, %v1029, 0.0
      %v1068 = vsel %vm871, %v1030, 0.0
      %v1069 = vsel %vm872, %v1031, 0.0
      %v1070 = vsel %vm873, %v1032, 0.0
      %v1071 = vsel %vm874, %v1033, 0.0
      %v1072 = vsel %vm875, %v1034, 0.0
      %v1073 = vsel %vm876, %v1035, 0.0
      %v1074 = vsel %vm877, %v1036, 0.0
      %v1075 = vmul.f32 %v1037, %v1037
      %v1076 = vmul.f32 %v1038, %v1038
      %v1077 = vmul.f32 %v1039, %v1039
      %v1078 = vmul.f32 %v1040, %v1040
      %v1079 = vmul.f32 %v1041, %v1041
      %v1080 = vmul.f32 %v1042, %v1042
      %v1081 = vmul.f32 %v1043, %v1043
      %v1082 = vmul.f32 %v1044, %v1044
      %v1083 = vmul.f32 %v1045, %v1045
      %v1084 = vmul.f32 %v1046, %v1046
      %v1085 = vmul.f32 %v1047, %v1047
      %v1086 = vmul.f32 %v1048, %v1048
      %v1087 = vmul.f32 %v1049, %v1049
      %v1088 = vmul.f32 %v1050, %v1050
      %v1089 = vmul.f32 %v1051, %v1051
      %v1090 = vmul.f32 %v1052, %v1052
      %v1091 = vmul.f32 %v1053, %v1053
      %v1092 = vmul.f32 %v1054, %v1054
      %v1093 = vmul.f32 %v1055, %v1055
      %v1094 = vmul.f32 %v1056, %v1056
      %v1095 = vmul.f32 %v1057, %v1057
      %v1096 = vmul.f32 %v1058, %v1058
      %v1097 = vmul.f32 %v1059, %v1059
      %v1098 = vmul.f32 %v1060, %v1060
      %v1099 = vmul.f32 %v1061, %v1061
      %v1100 = vmul.f32 %v1062, %v1062
      %v1101 = vmul.f32 %v1063, %v1063
      %v1102 = vmul.f32 %v1064, %v1064
      %v1103 = vmul.f32 %v1065, %v1065
      %v1104 = vmul.f32 %v1066, %v1066
      %v1105 = vmul.f32 %v1067, %v1067
      %v1106 = vmul.f32 %v1068, %v1068
      %v1107 = vmul.f32 %v1069, %v1069
      %v1108 = vmul.f32 %v1070, %v1070
      %v1109 = vmul.f32 %v1071, %v1071
      %v1110 = vmul.f32 %v1072, %v1072
      %v1111 = vmul.f32 %v1073, %v1073
      %v1112 = vmul.f32 %v1074, %v1074
      %v1113 = vsel %vm916, %v1075, 0.0
      %v1114 = vsel %vm916, %v1076, 0.0
      %v1115 = vadd.f32 %v1113, %v1114
      %v1116 = vsel %vm916, %v1077, 0.0
      %v1117 = vadd.f32 %v1115, %v1116
      %v1118 = vsel %vm916, %v1078, 0.0
      %v1119 = vadd.f32 %v1117, %v1118
      %v1120 = vsel %vm916, %v1079, 0.0
      %v1121 = vadd.f32 %v1119, %v1120
      %v1122 = vsel %vm916, %v1080, 0.0
      %v1123 = vadd.f32 %v1121, %v1122
      %v1124 = vsel %vm916, %v1081, 0.0
      %v1125 = vadd.f32 %v1123, %v1124
      %v1126 = vsel %vm916, %v1082, 0.0
      %v1127 = vadd.f32 %v1125, %v1126
      %v1128 = vsel %vm916, %v1083, 0.0
      %v1129 = vadd.f32 %v1127, %v1128
      %v1130 = vsel %vm916, %v1084, 0.0
      %v1131 = vadd.f32 %v1129, %v1130
      %v1132 = vsel %vm916, %v1085, 0.0
      %v1133 = vadd.f32 %v1131, %v1132
      %v1134 = vsel %vm916, %v1086, 0.0
      %v1135 = vadd.f32 %v1133, %v1134
      %v1136 = vsel %vm916, %v1087, 0.0
      %v1137 = vadd.f32 %v1135, %v1136
      %v1138 = vsel %vm916, %v1088, 0.0
      %v1139 = vadd.f32 %v1137, %v1138
      %v1140 = vsel %vm916, %v1089, 0.0
      %v1141 = vadd.f32 %v1139, %v1140
      %v1142 = vsel %vm916, %v1090, 0.0
      %v1143 = vadd.f32 %v1141, %v1142
      %v1144 = vsel %vm916, %v1091, 0.0
      %v1145 = vadd.f32 %v1143, %v1144
      %v1146 = vsel %vm916, %v1092, 0.0
      %v1147 = vadd.f32 %v1145, %v1146
      %v1148 = vsel %vm916, %v1093, 0.0
      %v1149 = vadd.f32 %v1147, %v1148
      %v1150 = vsel %vm916, %v1094, 0.0
      %v1151 = vadd.f32 %v1149, %v1150
      %v1152 = vsel %vm916, %v1095, 0.0
      %v1153 = vadd.f32 %v1151, %v1152
      %v1154 = vsel %vm916, %v1096, 0.0
      %v1155 = vadd.f32 %v1153, %v1154
      %v1156 = vsel %vm916, %v1097, 0.0
      %v1157 = vadd.f32 %v1155, %v1156
      %v1158 = vsel %vm916, %v1098, 0.0
      %v1159 = vadd.f32 %v1157, %v1158
      %v1160 = vsel %vm916, %v1099, 0.0
      %v1161 = vadd.f32 %v1159, %v1160
      %v1162 = vsel %vm916, %v1100, 0.0
      %v1163 = vadd.f32 %v1161, %v1162
      %v1164 = vsel %vm916, %v1101, 0.0
      %v1165 = vadd.f32 %v1163, %v1164
      %v1166 = vsel %vm916, %v1102, 0.0
      %v1167 = vadd.f32 %v1165, %v1166
      %v1168 = vsel %vm916, %v1103, 0.0
      %v1169 = vadd.f32 %v1167, %v1168
      %v1170 = vsel %vm916, %v1104, 0.0
      %v1171 = vadd.f32 %v1169, %v1170
      %v1172 = vsel %vm916, %v1105, 0.0
      %v1173 = vadd.f32 %v1171, %v1172
      %v1174 = vsel %vm916, %v1106, 0.0
      %v1175 = vadd.f32 %v1173, %v1174
      %v1176 = vsel %vm916, %v1107, 0.0
      %v1177 = vadd.f32 %v1175, %v1176
      %v1178 = vsel %vm916, %v1108, 0.0
      %v1179 = vadd.f32 %v1177, %v1178
      %v1180 = vsel %vm916, %v1109, 0.0
      %v1181 = vadd.f32 %v1179, %v1180
      %v1182 = vsel %vm916, %v1110, 0.0
      %v1183 = vadd.f32 %v1181, %v1182
      %v1184 = vsel %vm916, %v1111, 0.0
      %v1185 = vadd.f32 %v1183, %v1184
      %v1186 = vsel %vm916, %v1112, 0.0
      %v1187 = vadd.f32 %v1185, %v1186
      %v1188 = vrot.slane %v1187, 4
      %v1189 = vadd.f32 %v1187, %v1188
      %v1190 = vrot.slane %v1189, 2
      %v1191 = vadd.f32 %v1189, %v1190
      %v1192 = vrot.slane %v1191, 1
      %v1193 = vadd.f32 %v1191, %v1192
      %vm1194 = vcmp.eq.s32.totalorder %v726, 0
      %vm1195 = vcmp.eq.s32.totalorder %v726, 1
      %v1196 = vsel %vm1195, %v1193, 0.0
      %v1197 = vsel %vm1194, %v997, %v1196
      %1198 = vst.msk [vmem:[#allocation2] sm:$0xff] %vm916, %v1197
    $region21: #{tpu_custom_call.1} parent=1 // pred_fallthru
      _
    // Predicated region
    $region22: #{tpu_custom_call.1} parent=1 // pred_check
      _
    $region23: #{tpu_custom_call.1} parent=1 // pred_check_branch
      %1200 = sbr.rel (0) target = $region25
    $region24: #{tpu_custom_call.1} parent=1 // pred_region
      %s1202 = ssub.s32 128, 128
      %1203 = vsyncadd [#allocation3], %s1202
      %s1205 = sshll.u32 [#allocation2], 4
      %s1206 = int_to_ptr.vmem [resolvable:$true] %s1205
      %1208 = dma.vmem_to_hbm [thread:$0]  %s1206, 128, %s3, [#allocation3]
    $region25: #{tpu_custom_call.1} parent=1 // pred_fallthru
      _
    // Predicated region
    $region26: #{tpu_custom_call.1} parent=1 // pred_check
      _
    $region27: #{tpu_custom_call.1} parent=1 // pred_check_branch
      %1210 = sbr.rel (0) target = $region29
    $region28: #{tpu_custom_call.1} parent=1 // pred_region
      %1211 = dma.done [#allocation3], 128
    $region29: #{tpu_custom_call.1} parent=1 // pred_fallthru
      _
    %1212 = vsyncpa [#allocation3], 1

</llo_original>
